<compile_context>
chip_gen: v7x
topology: tpu7x:2x2x1
jax: 0.10.0
libtpu: 0.0.40
codegen_flags: <defaults>
</compile_context>

<pallas_src>
import functools

import jax
import jax.numpy as jnp
from jax.experimental import pallas as pl
from jax.experimental.pallas import tpu as pltpu

EPS = 1e-6


def _round_up(n, m):
    return ((n + m - 1) // m) * m


def _cdiv(a, b):
    return (a + b - 1) // b


def _tpu_generation():
    """Best-effort TPU generation from device_kind; None if unknown."""
    try:
        kind = jax.devices()[0].device_kind.lower()
    except Exception:
        return None
    for g in (7, 6, 5, 4):
        if f"v{g}" in kind:
            return g
    return None


def _pad_feature(d, gen):
    # 256-granule keeps the 2x256^2 MXU on v6e/v7x full-width; 128 is enough
    # for v5e's 4x128^2 and avoids waste for small dims.
    granule = 256 if (gen is None or gen >= 6) and d > 128 else 128
    return _round_up(d, granule)


def prepare_ffn_params(w1, b1, w2, b2, gamma, beta):
    """Pad parameters to lane granules and pre-cast weights to bf16.

    Call ONCE at parameter-load time; per-call pad/cast traffic can rival the
    kernel itself for small-batch calls.  Pad regions are exactly zero, which
    the kernel relies on (LN sums, matmul contractions, residual lanes).
    """
    gen = _tpu_generation()
    d_in, d_hid = w1.shape
    d_in_p = _pad_feature(d_in, gen)
    d_hid_p = _pad_feature(d_hid, gen)

    w1_p = jnp.zeros((d_in_p, d_hid_p), jnp.bfloat16).at[:d_in, :d_hid].set(
        w1.astype(jnp.bfloat16))
    w2_p = jnp.zeros((d_hid_p, d_in_p), jnp.bfloat16).at[:d_hid, :d_in].set(
        w2.astype(jnp.bfloat16))
    b1_p = jnp.zeros((1, d_hid_p), jnp.float32).at[0, :d_hid].set(
        b1.astype(jnp.float32))
    b2_p = jnp.zeros((1, d_in_p), jnp.float32).at[0, :d_in].set(
        b2.astype(jnp.float32))
    g_p = jnp.zeros((1, d_in_p), jnp.float32).at[0, :d_in].set(
        gamma.astype(jnp.float32))
    be_p = jnp.zeros((1, d_in_p), jnp.float32).at[0, :d_in].set(
        beta.astype(jnp.float32))
    return w1_p, b1_p, w2_p, b2_p, g_p, be_p


def _ffn_kernel(x_ref, w1_ref, b1_ref, w2_ref, b2_ref, g_ref, beta_ref, o_ref,
                *, d_in, inv_d_in, hid_slices, bf16_h):
    # x_ref: (tm, d_in_p) tile of rows; params are full (constant) blocks.
    x = x_ref[...].astype(jnp.float32)
    d_in_p = x.shape[-1]

    # Two-pass LayerNorm over the TRUE feature width.  Padded lanes of x are
    # zero, so sum(x) over the padded width equals the true sum; (x - mean)
    # is explicitly masked on padded lanes so the variance sum is exact
    # (avoids the E[x^2] - mean^2 cancellation flagged in review).
    mean = jnp.sum(x, axis=-1, keepdims=True) * inv_d_in
    xc = x - mean
    if d_in_p != d_in:
        lane = jax.lax.broadcasted_iota(jnp.int32, (1, d_in_p), 1)
        xc = jnp.where(lane < d_in, xc, 0.0)
    var = jnp.sum(xc * xc, axis=-1, keepdims=True) * inv_d_in
    xn = xc * jax.lax.rsqrt(var + EPS)
    # gamma/beta pads are zero -> padded lanes of xn stay zero and contribute
    # nothing to the matmuls.
    xn = xn * g_ref[...] + beta_ref[...]
    xn_b = xn.astype(jnp.bfloat16)

    # w_2(relu(w_1(xn))): bf16 MXU inputs, f32 accumulation of the output.
    # The hidden dim is optionally processed in chunks so the (tm, d_hid)
    # intermediate never gets large in VMEM.
    y = None
    for start, size in hid_slices:
        w1c = w1_ref[:, start:start + size]          # (d_in_p, size) bf16
        b1c = b1_ref[:, start:start + size]          # (1, size) f32
        w2c = w2_ref[start:start + size, :]          # (size, d_in_p) bf16
        if bf16_h:
            # bf16 bias+ReLU epilogue (v6e/v7x bf16 VALU): halves vreg/VMEM
            # traffic on the largest elementwise tensor.
            h = jnp.dot(xn_b, w1c, preferred_element_type=jnp.bfloat16)
            h = jnp.maximum(h + b1c.astype(jnp.bfloat16), 0.0)
        else:
            h = jnp.dot(xn_b, w1c, preferred_element_type=jnp.float32)
            h = jnp.maximum(h + b1c, 0.0).astype(jnp.bfloat16)
        contrib = jnp.dot(h, w2c, preferred_element_type=jnp.float32)
        y = contrib if y is None else y + contrib

    # dropout (eval mode) = identity; residual uses the ORIGINAL x.  b2 and
    # the w2 output-column pads are zero, so padded output lanes stay zero.
    o_ref[...] = (y + b2_ref[...] + x).astype(o_ref.dtype)


def position_wise_ffn(x, w1, b1, w2, b2, gamma, beta, *, prepared=None,
                      tm=None):
    """x: (B, S, d_in). w1: (d_in, d_hid), w2: (d_hid, d_in) (math layout,
    i.e. transpose of nn.Linear.weight). Returns same shape/dtype as x."""
    B, S, d_in = x.shape
    d_hid = w1.shape[1]
    N = B * S
    gen = _tpu_generation()

    if prepared is None:
        prepared = prepare_ffn_params(w1, b1, w2, b2, gamma, beta)
    w1_p, b1_p, w2_p, b2_p, g_p, be_p = prepared
    d_in_p, d_hid_p = w1_p.shape

    # ---- generation-dependent row tile & VMEM budget ----
    if tm is None:
        if gen in (5, 6):          # 128 MiB VMEM: amortize per-step overhead
            tm = 1024 if d_hid_p <= 2048 else 512
        else:                      # v7x (64 MiB VMEM) or unknown: stay small
            tm = 128 if d_hid_p >= 4096 else 256
    vmem_limit = (100 << 20) if gen in (5, 6) else (56 << 20)

    tm = max(8, min(tm, _round_up(N, 8)))
    if gen is not None and gen >= 7 and N > 8 and _cdiv(N, tm) < 2:
        # v7x has 2 TensorCores: give the "parallel" row grid >= 2 steps.
        tm = _round_up(_cdiv(N, 2), 8)

    # ---- hidden-dim chunking (only for very wide hidden layers) ----
    bf16_h = gen is not None and gen >= 6
    h_bytes = tm * d_hid_p * (4 if bf16_h else 8)
    hid_chunk = 1024 if (d_hid_p > 1024 and h_bytes > (12 << 20)) else d_hid_p
    hid_slices = tuple(
        (c, min(hid_chunk, d_hid_p - c)) for c in range(0, d_hid_p, hid_chunk))

    # ---- activations: pad feature lanes only when needed; the ragged row
    # tail is handled by a cdiv grid + masked stores, never padded to a tile
    # multiple ----
    x_flat = x.reshape(N, d_in)
    need_pad = (d_in != d_in_p) or (N % 8 != 0)
    if need_pad:
        n_rows = _round_up(N, 8)
        x2 = jnp.zeros((n_rows, d_in_p), x.dtype).at[:N, :d_in].set(x_flat)
    else:
        n_rows = N
        x2 = x_flat

    grid = (_cdiv(n_rows, tm),)

    kernel = functools.partial(
        _ffn_kernel, d_in=d_in, inv_d_in=1.0 / d_in,
        hid_slices=hid_slices, bf16_h=bf16_h)

    def build(single_buffer_consts):
        def const_spec(r, c):
            if single_buffer_consts:
                # Constant index_map -> a single VMEM buffer is enough.
                return pl.BlockSpec((r, c), lambda i: (0, 0),
                                    pipeline_mode=pl.Buffered(1))
            return pl.BlockSpec((r, c), lambda i: (0, 0))

        return pl.pallas_call(
            kernel,
            out_shape=jax.ShapeDtypeStruct((n_rows, d_in_p), x.dtype),
            grid_spec=pltpu.PrefetchScalarGridSpec(
                num_scalar_prefetch=0,
                grid=grid,
                in_specs=[
                    pl.BlockSpec((tm, d_in_p), lambda i: (i, 0)),  # x rows
                    const_spec(d_in_p, d_hid_p),   # w1 (bf16)
                    const_spec(1, d_hid_p),        # b1
                    const_spec(d_hid_p, d_in_p),   # w2 (bf16)
                    const_spec(1, d_in_p),         # b2
                    const_spec(1, d_in_p),         # gamma
                    const_spec(1, d_in_p),         # beta
                ],
                out_specs=pl.BlockSpec((tm, d_in_p), lambda i: (i, 0)),
            ),
            # Rows are independent -> "parallel" shards the grid across TCs.
            compiler_params=pltpu.CompilerParams(
                dimension_semantics=("parallel",),
                vmem_limit_bytes=vmem_limit,
            ),
            # Safe: in/out specs share tiling + index_map; only alias when x2
            # is a fresh padded buffer (never the caller's x).
            input_output_aliases={0: 0} if need_pad else {},
        )

    args = (x2, w1_p, b1_p, w2_p, b2_p, g_p, be_p)
    try:
        out = build(True)(*args)
    except Exception:
        # pipeline_mode=pl.Buffered(1) not supported by this jax build; fall
        # back to default double-buffered constant blocks.
        out = build(False)(*args)

    if need_pad:
        out = out[:N, :d_in]
    return out.reshape(B, S, d_in)


def _reference(x, w1, b1, w2, b2, gamma, beta):
    mean = jnp.mean(x, axis=-1, keepdims=True)
    var = jnp.mean((x - mean) ** 2, axis=-1, keepdims=True)
    xn = (x - mean) / jnp.sqrt(var + EPS) * gamma + beta
    h = jnp.maximum(xn @ w1 + b1, 0.0)
    return h @ w2 + b2 + x


if __name__ == "__main__":
    B, S, d_in, d_hid = 2, 8, 32, 64

    key = jax.random.PRNGKey(0)
    kx, k1, k2, k3, k4 = jax.random.split(key, 5)

    x = jax.random.normal(kx, (B, S, d_in), dtype=jnp.float32)

    # Deterministic parameter init (Linear-ish scaling).
    w1 = jax.random.normal(k1, (d_in, d_hid), dtype=jnp.float32) / jnp.sqrt(d_in)
    b1 = jax.random.normal(k2, (d_hid,), dtype=jnp.float32) * 0.01
    w2 = jax.random.normal(k3, (d_hid, d_in), dtype=jnp.float32) / jnp.sqrt(d_hid)
    b2 = jax.random.normal(k4, (d_in,), dtype=jnp.float32) * 0.01
    gamma = jnp.ones((d_in,), dtype=jnp.float32)
    beta = jnp.zeros((d_in,), dtype=jnp.float32)

    # Hoisted (one-time) weight pad + bf16 cast.
    prepared = prepare_ffn_params(w1, b1, w2, b2, gamma, beta)

    out = position_wise_ffn(x, w1, b1, w2, b2, gamma, beta, prepared=prepared)
    out = jax.block_until_ready(out)

    ref = _reference(x, w1, b1, w2, b2, gamma, beta)
    assert out.shape == x.shape and out.dtype == x.dtype
    # bf16 matmul inputs (+ bf16 ReLU epilogue on v6e/v7x) -> widened tol.
    err = float(jnp.max(jnp.abs(out - ref)))
    assert jnp.allclose(out, ref, atol=3e-2, rtol=3e-2), err

    print("KERNEL_OK")
</pallas_src>

<mosaic_0001>
module attributes {stable_mosaic.version = 11 : i64} {
  func.func @_ffn_kernel(%arg0: i32, %arg1: memref<16x128xf32, #tpu.memory_space<vmem>>, %arg2: memref<128x128xbf16, #tpu.memory_space<vmem>>, %arg3: memref<1x128xf32, #tpu.memory_space<vmem>>, %arg4: memref<128x128xbf16, #tpu.memory_space<vmem>>, %arg5: memref<1x128xf32, #tpu.memory_space<vmem>>, %arg6: memref<1x128xf32, #tpu.memory_space<vmem>>, %arg7: memref<1x128xf32, #tpu.memory_space<vmem>>, %arg8: memref<16x128xf32, #tpu.memory_space<vmem>>) attributes {dimension_semantics = [#tpu.dimension_semantics<parallel>], iteration_bounds = array<i64: 1>, scalar_prefetch = 0 : i64, scratch_operands = 0 : i64, tpu.core_type = #tpu.core_type<tc>, window_params = [{transform_indices = @transform_0, window_bounds = array<i64: 16, 128>}, {pipeline_mode = #tpu.pipeline_mode<synchronous>, transform_indices = @transform_1, window_bounds = array<i64: 128, 128>}, {pipeline_mode = #tpu.pipeline_mode<synchronous>, transform_indices = @transform_2, window_bounds = array<i64: 1, 128>}, {pipeline_mode = #tpu.pipeline_mode<synchronous>, transform_indices = @transform_3, window_bounds = array<i64: 128, 128>}, {pipeline_mode = #tpu.pipeline_mode<synchronous>, transform_indices = @transform_4, window_bounds = array<i64: 1, 128>}, {pipeline_mode = #tpu.pipeline_mode<synchronous>, transform_indices = @transform_5, window_bounds = array<i64: 1, 128>}, {pipeline_mode = #tpu.pipeline_mode<synchronous>, transform_indices = @transform_6, window_bounds = array<i64: 1, 128>}, {transform_indices = @transform_7, window_bounds = array<i64: 16, 128>}]} {
    %c0 = arith.constant 0 : index
    %c0_0 = arith.constant 0 : index
    %0 = vector.load %arg1[%c0, %c0_0] : memref<16x128xf32, #tpu.memory_space<vmem>>, vector<16x128xf32>
    %cst = arith.constant dense<0.000000e+00> : vector<16xf32>
    %1 = vector.multi_reduction <add>, %0, %cst [1] : vector<16x128xf32> to vector<16xf32>
    %2 = vector.shape_cast %1 : vector<16xf32> to vector<16x1xf32>
    %cst_1 = arith.constant 3.125000e-02 : f32
    %3 = vector.broadcast %cst_1 : f32 to vector<16x1xf32>
    %4 = arith.mulf %2, %3 : vector<16x1xf32>
    %5 = vector.broadcast %4 : vector<16x1xf32> to vector<16x128xf32>
    %6 = arith.subf %0, %5 : vector<16x128xf32>
    %7 = tpu.iota {dimensions = array<i32: 1>} : vector<1x128xi32>
    %c32_i32 = arith.constant 32 : i32
    %8 = vector.broadcast %c32_i32 : i32 to vector<1x128xi32>
    %9 = arith.cmpi slt, %7, %8 : vector<1x128xi32>
    %cst_2 = arith.constant 0.000000e+00 : f32
    %10 = vector.shape_cast %9 : vector<1x128xi1> to vector<1x128xi1>
    %11 = vector.broadcast %10 : vector<1x128xi1> to vector<16x128xi1>
    %12 = vector.broadcast %cst_2 : f32 to vector<16x128xf32>
    %13 = arith.select %11, %6, %12 : vector<16x128xi1>, vector<16x128xf32>
    %14 = arith.mulf %13, %13 : vector<16x128xf32>
    %cst_3 = arith.constant dense<0.000000e+00> : vector<16xf32>
    %15 = vector.multi_reduction <add>, %14, %cst_3 [1] : vector<16x128xf32> to vector<16xf32>
    %16 = vector.shape_cast %15 : vector<16xf32> to vector<16x1xf32>
    %cst_4 = arith.constant 3.125000e-02 : f32
    %17 = vector.broadcast %cst_4 : f32 to vector<16x1xf32>
    %18 = arith.mulf %16, %17 : vector<16x1xf32>
    %cst_5 = arith.constant 9.99999997E-7 : f32
    %19 = vector.broadcast %cst_5 : f32 to vector<16x1xf32>
    %20 = arith.addf %18, %19 : vector<16x1xf32>
    %21 = math.rsqrt %20 : vector<16x1xf32>
    %22 = vector.broadcast %21 : vector<16x1xf32> to vector<16x128xf32>
    %23 = arith.mulf %13, %22 : vector<16x128xf32>
    %c0_6 = arith.constant 0 : index
    %c0_7 = arith.constant 0 : index
    %24 = vector.load %arg6[%c0_6, %c0_7] : memref<1x128xf32, #tpu.memory_space<vmem>>, vector<1x128xf32>
    %25 = vector.broadcast %24 : vector<1x128xf32> to vector<16x128xf32>
    %26 = arith.mulf %23, %25 : vector<16x128xf32>
    %c0_8 = arith.constant 0 : index
    %c0_9 = arith.constant 0 : index
    %27 = vector.load %arg7[%c0_8, %c0_9] : memref<1x128xf32, #tpu.memory_space<vmem>>, vector<1x128xf32>
    %28 = vector.broadcast %27 : vector<1x128xf32> to vector<16x128xf32>
    %29 = arith.addf %26, %28 : vector<16x128xf32>
    %30 = arith.truncf %29 : vector<16x128xf32> to vector<16x128xbf16>
    %c0_10 = arith.constant 0 : index
    %c0_11 = arith.constant 0 : index
    %31 = vector.load %arg2[%c0_10, %c0_11] : memref<128x128xbf16, #tpu.memory_space<vmem>>, vector<128x128xbf16>
    %c0_12 = arith.constant 0 : index
    %c0_13 = arith.constant 0 : index
    %32 = vector.load %arg3[%c0_12, %c0_13] : memref<1x128xf32, #tpu.memory_space<vmem>>, vector<1x128xf32>
    %c0_14 = arith.constant 0 : index
    %c0_15 = arith.constant 0 : index
    %33 = vector.load %arg4[%c0_14, %c0_15] : memref<128x128xbf16, #tpu.memory_space<vmem>>, vector<128x128xbf16>
    %cst_16 = arith.constant dense<0.000000e+00> : vector<16x128xf32>
    %34 = tpu.matmul %30, %31, %cst_16 {dimension_numbers = #tpu.dot_dimension_numbers<[1], [0], [0], [1], [0, 0, 1, 1], [], []>} : vector<16x128xbf16>, vector<128x128xbf16>, vector<16x128xf32> -> vector<16x128xf32>
    %35 = vector.broadcast %32 : vector<1x128xf32> to vector<16x128xf32>
    %36 = arith.addf %34, %35 : vector<16x128xf32>
    %cst_17 = arith.constant 0.000000e+00 : f32
    %37 = vector.broadcast %cst_17 : f32 to vector<16x128xf32>
    %38 = arith.maximumf %36, %37 : vector<16x128xf32>
    %39 = arith.truncf %38 : vector<16x128xf32> to vector<16x128xbf16>
    %cst_18 = arith.constant dense<0.000000e+00> : vector<16x128xf32>
    %40 = tpu.matmul %39, %33, %cst_18 {dimension_numbers = #tpu.dot_dimension_numbers<[1], [0], [0], [1], [0, 0, 1, 1], [], []>} : vector<16x128xbf16>, vector<128x128xbf16>, vector<16x128xf32> -> vector<16x128xf32>
    %c0_19 = arith.constant 0 : index
    %c0_20 = arith.constant 0 : index
    %41 = vector.load %arg5[%c0_19, %c0_20] : memref<1x128xf32, #tpu.memory_space<vmem>>, vector<1x128xf32>
    %42 = vector.broadcast %41 : vector<1x128xf32> to vector<16x128xf32>
    %43 = arith.addf %40, %42 : vector<16x128xf32>
    %44 = arith.addf %43, %0 : vector<16x128xf32>
    %c0_21 = arith.constant 0 : index
    %c0_22 = arith.constant 0 : index
    %45 = vector.load %arg8[%c0_21, %c0_22] : memref<16x128xf32, #tpu.memory_space<vmem>>, vector<16x128xf32>
    tpu.vector_store %arg8[%c0_21, %c0_22], %44 {strides = array<i32>} : memref<16x128xf32, #tpu.memory_space<vmem>>, vector<16x128xf32>,
    return
  }
  func.func @transform_0(%arg0: i32) -> (i32, i32) {
    %c0_i32 = arith.constant 0 : i32
    %c0_i32_0 = arith.constant 0 : i32
    return %arg0, %c0_i32 : i32, i32
  }
  func.func @transform_1(%arg0: i32) -> (i32, i32) {
    %c0_i32 = arith.constant 0 : i32
    %c0_i32_0 = arith.constant 0 : i32
    %c0_i32_1 = arith.constant 0 : i32
    return %c0_i32, %c0_i32_0 : i32, i32
  }
  func.func @transform_2(%arg0: i32) -> (i32, i32) {
    %c0_i32 = arith.constant 0 : i32
    %c0_i32_0 = arith.constant 0 : i32
    %c0_i32_1 = arith.constant 0 : i32
    return %c0_i32, %c0_i32_0 : i32, i32
  }
  func.func @transform_3(%arg0: i32) -> (i32, i32) {
    %c0_i32 = arith.constant 0 : i32
    %c0_i32_0 = arith.constant 0 : i32
    %c0_i32_1 = arith.constant 0 : i32
    return %c0_i32, %c0_i32_0 : i32, i32
  }
  func.func @transform_4(%arg0: i32) -> (i32, i32) {
    %c0_i32 = arith.constant 0 : i32
    %c0_i32_0 = arith.constant 0 : i32
    %c0_i32_1 = arith.constant 0 : i32
    return %c0_i32, %c0_i32_0 : i32, i32
  }
  func.func @transform_5(%arg0: i32) -> (i32, i32) {
    %c0_i32 = arith.constant 0 : i32
    %c0_i32_0 = arith.constant 0 : i32
    %c0_i32_1 = arith.constant 0 : i32
    return %c0_i32, %c0_i32_0 : i32, i32
  }
  func.func @transform_6(%arg0: i32) -> (i32, i32) {
    %c0_i32 = arith.constant 0 : i32
    %c0_i32_0 = arith.constant 0 : i32
    %c0_i32_1 = arith.constant 0 : i32
    return %c0_i32, %c0_i32_0 : i32, i32
  }
  func.func @transform_7(%arg0: i32) -> (i32, i32) {
    %c0_i32 = arith.constant 0 : i32
    %c0_i32_0 = arith.constant 0 : i32
    return %arg0, %c0_i32 : i32, i32
  }
}

module attributes {stable_mosaic.version = 11 : i64} {
  func.func @_ffn_kernel(%arg0: i32, %arg1: memref<16x128xf32, #tpu.memory_space<vmem>>, %arg2: memref<128x128xbf16, #tpu.memory_space<vmem>>, %arg3: memref<1x128xf32, #tpu.memory_space<vmem>>, %arg4: memref<128x128xbf16, #tpu.memory_space<vmem>>, %arg5: memref<1x128xf32, #tpu.memory_space<vmem>>, %arg6: memref<1x128xf32, #tpu.memory_space<vmem>>, %arg7: memref<1x128xf32, #tpu.memory_space<vmem>>, %arg8: memref<16x128xf32, #tpu.memory_space<vmem>>) attributes {dimension_semantics = [#tpu.dimension_semantics<parallel>], iteration_bounds = array<i64: 1>, scalar_prefetch = 0 : i64, scratch_operands = 0 : i64, tpu.core_type = #tpu.core_type<tc>, window_params = [{transform_indices = @transform_0, window_bounds = array<i64: 16, 128>}, {pipeline_mode = #tpu.pipeline_mode<synchronous>, transform_indices = @transform_1, window_bounds = array<i64: 128, 128>}, {pipeline_mode = #tpu.pipeline_mode<synchronous>, transform_indices = @transform_2, window_bounds = array<i64: 1, 128>}, {pipeline_mode = #tpu.pipeline_mode<synchronous>, transform_indices = @transform_3, window_bounds = array<i64: 128, 128>}, {pipeline_mode = #tpu.pipeline_mode<synchronous>, transform_indices = @transform_4, window_bounds = array<i64: 1, 128>}, {pipeline_mode = #tpu.pipeline_mode<synchronous>, transform_indices = @transform_5, window_bounds = array<i64: 1, 128>}, {pipeline_mode = #tpu.pipeline_mode<synchronous>, transform_indices = @transform_6, window_bounds = array<i64: 1, 128>}, {transform_indices = @transform_7, window_bounds = array<i64: 16, 128>}]} {
    %c0 = arith.constant 0 : index
    %c0_0 = arith.constant 0 : index
    %0 = vector.load %arg1[%c0, %c0_0] : memref<16x128xf32, #tpu.memory_space<vmem>>, vector<16x128xf32>
    %cst = arith.constant dense<0.000000e+00> : vector<16xf32>
    %1 = vector.multi_reduction <add>, %0, %cst [1] : vector<16x128xf32> to vector<16xf32>
    %2 = vector.shape_cast %1 : vector<16xf32> to vector<16x1xf32>
    %cst_1 = arith.constant 3.125000e-02 : f32
    %3 = vector.broadcast %cst_1 : f32 to vector<16x1xf32>
    %4 = arith.mulf %2, %3 : vector<16x1xf32>
    %5 = vector.broadcast %4 : vector<16x1xf32> to vector<16x128xf32>
    %6 = arith.subf %0, %5 : vector<16x128xf32>
    %7 = tpu.iota {dimensions = array<i32: 1>} : vector<1x128xi32>
    %c32_i32 = arith.constant 32 : i32
    %8 = vector.broadcast %c32_i32 : i32 to vector<1x128xi32>
    %9 = arith.cmpi slt, %7, %8 : vector<1x128xi32>
    %cst_2 = arith.constant 0.000000e+00 : f32
    %10 = vector.shape_cast %9 : vector<1x128xi1> to vector<1x128xi1>
    %11 = vector.broadcast %10 : vector<1x128xi1> to vector<16x128xi1>
    %12 = vector.broadcast %cst_2 : f32 to vector<16x128xf32>
    %13 = arith.select %11, %6, %12 : vector<16x128xi1>, vector<16x128xf32>
    %14 = arith.mulf %13, %13 : vector<16x128xf32>
    %cst_3 = arith.constant dense<0.000000e+00> : vector<16xf32>
    %15 = vector.multi_reduction <add>, %14, %cst_3 [1] : vector<16x128xf32> to vector<16xf32>
    %16 = vector.shape_cast %15 : vector<16xf32> to vector<16x1xf32>
    %cst_4 = arith.constant 3.125000e-02 : f32
    %17 = vector.broadcast %cst_4 : f32 to vector<16x1xf32>
    %18 = arith.mulf %16, %17 : vector<16x1xf32>
    %cst_5 = arith.constant 9.99999997E-7 : f32
    %19 = vector.broadcast %cst_5 : f32 to vector<16x1xf32>
    %20 = arith.addf %18, %19 : vector<16x1xf32>
    %21 = math.rsqrt %20 : vector<16x1xf32>
    %22 = vector.broadcast %21 : vector<16x1xf32> to vector<16x128xf32>
    %23 = arith.mulf %13, %22 : vector<16x128xf32>
    %c0_6 = arith.constant 0 : index
    %c0_7 = arith.constant 0 : index
    %24 = vector.load %arg6[%c0_6, %c0_7] : memref<1x128xf32, #tpu.memory_space<vmem>>, vector<1x128xf32>
    %25 = vector.broadcast %24 : vector<1x128xf32> to vector<16x128xf32>
    %26 = arith.mulf %23, %25 : vector<16x128xf32>
    %c0_8 = arith.constant 0 : index
    %c0_9 = arith.constant 0 : index
    %27 = vector.load %arg7[%c0_8, %c0_9] : memref<1x128xf32, #tpu.memory_space<vmem>>, vector<1x128xf32>
    %28 = vector.broadcast %27 : vector<1x128xf32> to vector<16x128xf32>
    %29 = arith.addf %26, %28 : vector<16x128xf32>
    %30 = arith.truncf %29 : vector<16x128xf32> to vector<16x128xbf16>
    %c0_10 = arith.constant 0 : index
    %c0_11 = arith.constant 0 : index
    %31 = vector.load %arg2[%c0_10, %c0_11] : memref<128x128xbf16, #tpu.memory_space<vmem>>, vector<128x128xbf16>
    %c0_12 = arith.constant 0 : index
    %c0_13 = arith.constant 0 : index
    %32 = vector.load %arg3[%c0_12, %c0_13] : memref<1x128xf32, #tpu.memory_space<vmem>>, vector<1x128xf32>
    %c0_14 = arith.constant 0 : index
    %c0_15 = arith.constant 0 : index
    %33 = vector.load %arg4[%c0_14, %c0_15] : memref<128x128xbf16, #tpu.memory_space<vmem>>, vector<128x128xbf16>
    %cst_16 = arith.constant dense<0.000000e+00> : vector<16x128xf32>
    %34 = tpu.matmul %30, %31, %cst_16 {dimension_numbers = #tpu.dot_dimension_numbers<[1], [0], [0], [1], [0, 0, 1, 1], [], []>} : vector<16x128xbf16>, vector<128x128xbf16>, vector<16x128xf32> -> vector<16x128xf32>
    %35 = vector.broadcast %32 : vector<1x128xf32> to vector<16x128xf32>
    %36 = arith.addf %34, %35 : vector<16x128xf32>
    %cst_17 = arith.constant 0.000000e+00 : f32
    %37 = vector.broadcast %cst_17 : f32 to vector<16x128xf32>
    %38 = arith.maximumf %36, %37 : vector<16x128xf32>
    %39 = arith.truncf %38 : vector<16x128xf32> to vector<16x128xbf16>
    %cst_18 = arith.constant dense<0.000000e+00> : vector<16x128xf32>
    %40 = tpu.matmul %39, %33, %cst_18 {dimension_numbers = #tpu.dot_dimension_numbers<[1], [0], [0], [1], [0, 0, 1, 1], [], []>} : vector<16x128xbf16>, vector<128x128xbf16>, vector<16x128xf32> -> vector<16x128xf32>
    %c0_19 = arith.constant 0 : index
    %c0_20 = arith.constant 0 : index
    %41 = vector.load %arg5[%c0_19, %c0_20] : memref<1x128xf32, #tpu.memory_space<vmem>>, vector<1x128xf32>
    %42 = vector.broadcast %41 : vector<1x128xf32> to vector<16x128xf32>
    %43 = arith.addf %40, %42 : vector<16x128xf32>
    %44 = arith.addf %43, %0 : vector<16x128xf32>
    %c0_21 = arith.constant 0 : index
    %c0_22 = arith.constant 0 : index
    %45 = vector.load %arg8[%c0_21, %c0_22] : memref<16x128xf32, #tpu.memory_space<vmem>>, vector<16x128xf32>
    tpu.vector_store %arg8[%c0_21, %c0_22], %44 {strides = array<i32>} : memref<16x128xf32, #tpu.memory_space<vmem>>, vector<16x128xf32>,
    return
  }
  func.func @transform_0(%arg0: i32) -> (i32, i32) {
    %c0_i32 = arith.constant 0 : i32
    %c0_i32_0 = arith.constant 0 : i32
    return %arg0, %c0_i32 : i32, i32
  }
  func.func @transform_1(%arg0: i32) -> (i32, i32) {
    %c0_i32 = arith.constant 0 : i32
    %c0_i32_0 = arith.constant 0 : i32
    %c0_i32_1 = arith.constant 0 : i32
    return %c0_i32, %c0_i32_0 : i32, i32
  }
  func.func @transform_2(%arg0: i32) -> (i32, i32) {
    %c0_i32 = arith.constant 0 : i32
    %c0_i32_0 = arith.constant 0 : i32
    %c0_i32_1 = arith.constant 0 : i32
    return %c0_i32, %c0_i32_0 : i32, i32
  }
  func.func @transform_3(%arg0: i32) -> (i32, i32) {
    %c0_i32 = arith.constant 0 : i32
    %c0_i32_0 = arith.constant 0 : i32
    %c0_i32_1 = arith.constant 0 : i32
    return %c0_i32, %c0_i32_0 : i32, i32
  }
  func.func @transform_4(%arg0: i32) -> (i32, i32) {
    %c0_i32 = arith.constant 0 : i32
    %c0_i32_0 = arith.constant 0 : i32
    %c0_i32_1 = arith.constant 0 : i32
    return %c0_i32, %c0_i32_0 : i32, i32
  }
  func.func @transform_5(%arg0: i32) -> (i32, i32) {
    %c0_i32 = arith.constant 0 : i32
    %c0_i32_0 = arith.constant 0 : i32
    %c0_i32_1 = arith.constant 0 : i32
    return %c0_i32, %c0_i32_0 : i32, i32
  }
  func.func @transform_6(%arg0: i32) -> (i32, i32) {
    %c0_i32 = arith.constant 0 : i32
    %c0_i32_0 = arith.constant 0 : i32
    %c0_i32_1 = arith.constant 0 : i32
    return %c0_i32, %c0_i32_0 : i32, i32
  }
  func.func @transform_7(%arg0: i32) -> (i32, i32) {
    %c0_i32 = arith.constant 0 : i32
    %c0_i32_0 = arith.constant 0 : i32
    return %arg0, %c0_i32 : i32, i32
  }
}

</mosaic_0001>

<llo_original>
// kernel: tpu_custom_call.1
$region0: #{tpu_custom_call.1}
  #allocation0 [shape = 'u32[]', space=smem, size = 0x4, offset = 0x4, fixed_abs, tag = 'smem constant byte address 0x4 - core index']
  #allocation1 [shape = 'u32[144,128]{1,0:T(1,128)}', space=vmem, size = 0x12000, scoped, tag = 'internal scratch']
  %s0 = inlined_call_operand.hbm [shape: f32[16,128], index: 0, kind: input, shape index: {}, may-alias: {0,7}]
  %s1 = inlined_call_operand.hbm [shape: bf16[128,128], index: 1, kind: input, shape index: {}]
  %s2 = inlined_call_operand.vmem [shape: f32[1,128], index: 2, kind: input, shape index: {}]
  %s3 = inlined_call_operand.hbm [shape: bf16[128,128], index: 3, kind: input, shape index: {}]
  %s4 = inlined_call_operand.vmem [shape: f32[1,128], index: 4, kind: input, shape index: {}]
  %s5 = inlined_call_operand.vmem [shape: f32[1,128], index: 5, kind: input, shape index: {}]
  %s6 = inlined_call_operand.vmem [shape: f32[1,128], index: 6, kind: input, shape index: {}]
  %s7 = inlined_call_operand.hbm [shape: f32[16,128], index: 7, kind: output, shape index: {}, may-alias: {0,7}]
  %s8 = sld [smem:[#allocation0]]
  $region50: #{tpu_custom_call.1} parent=0
    _
  %s10 = ssub.s32 1, %s8
  %s11 = scalar_select 0, %s10, %s8
  $region1: #{tpu_custom_call.1} parent=0
    #allocation2 [shape = 'u8[8192]{0}', space=vmem, size = 0x2000, scoped, tag = 'input window, operand 0, single buffered']
    #allocation3 [shape = 's32[1]{0}', space=sflag, size = 0x4, scoped, tag = 'scoped memory for tpu_custom_call.1']
    #allocation4 [shape = 's32[1]{0}', space=sflag, size = 0x4, scoped, tag = 'scoped memory for tpu_custom_call.1']
    #allocation5 [shape = 'u8[32768]{0}', space=vmem, size = 0x8000, scoped, tag = 'input window, operand 1, single buffered']
    #allocation6 [shape = 's32[1]{0}', space=sflag, size = 0x4, scoped, tag = 'scoped memory for tpu_custom_call.1']
    #allocation7 [shape = 'u8[32768]{0}', space=vmem, size = 0x8000, scoped, tag = 'input window, operand 3, single buffered']
    #allocation8 [shape = 'u8[8192]{0}', space=vmem, size = 0x2000, scoped, tag = 'output window, operand 0, single buffered']
    %12 = vsyncpa [#allocation3], 0
    %13 = vsyncpa [#allocation6], 0
    %14 = vsyncpa [#allocation4], 0
    // Predicated region
    $region2: #{tpu_custom_call.1} parent=1 // pred_check
      _
    $region3: #{tpu_custom_call.1} parent=1 // pred_check_branch
      %16 = sbr.rel (0) target = $region5
    $region4: #{tpu_custom_call.1} parent=1 // pred_region
      %s18 = ssub.s32 256, 256
      %19 = vsyncadd [#allocation3], %s18
      %s20 = sshll.u32 [#allocation2], 4
      %s21 = int_to_ptr.vmem [resolvable:$true] %s20
      %26 = dma.hbm_to_vmem [thread:$0]  %s0, 256, %s21, [#allocation3], 128, 128, 8
    $region5: #{tpu_custom_call.1} parent=1 // pred_fallthru
      _
    // Predicated region
    $region6: #{tpu_custom_call.1} parent=1 // pred_check
      _
    $region7: #{tpu_custom_call.1} parent=1 // pred_check_branch
      %28 = sbr.rel (0) target = $region9
    $region8: #{tpu_custom_call.1} parent=1 // pred_region
      %s30 = ssub.s32 1024, 1024
      %31 = vsyncadd [#allocation6], %s30
      %s32 = sshll.u32 [#allocation5], 4
      %s33 = int_to_ptr.vmem [resolvable:$true] %s32
      %38 = dma.hbm_to_vmem [thread:$0]  %s1, 1024, %s33, [#allocation6], 64, 64, 4
    $region9: #{tpu_custom_call.1} parent=1 // pred_fallthru
      _
    // Predicated region
    $region10: #{tpu_custom_call.1} parent=1 // pred_check
      _
    $region11: #{tpu_custom_call.1} parent=1 // pred_check_branch
      %40 = sbr.rel (0) target = $region13
    $region12: #{tpu_custom_call.1} parent=1 // pred_region
      _
    $region13: #{tpu_custom_call.1} parent=1 // pred_fallthru
      _
    // Predicated region
    $region14: #{tpu_custom_call.1} parent=1 // pred_check
      _
    $region15: #{tpu_custom_call.1} parent=1 // pred_check_branch
      %42 = sbr.rel (0) target = $region17
    $region16: #{tpu_custom_call.1} parent=1 // pred_region
      %s44 = ssub.s32 1024, 1024
      %45 = vsyncadd [#allocation6], %s44
      %s46 = sshll.u32 [#allocation7], 4
      %s47 = int_to_ptr.vmem [resolvable:$true] %s46
      %52 = dma.hbm_to_vmem [thread:$0]  %s3, 1024, %s47, [#allocation6], 64, 64, 4
    $region17: #{tpu_custom_call.1} parent=1 // pred_fallthru
      _
    // Predicated region
    $region18: #{tpu_custom_call.1} parent=1 // pred_check
      _
    $region19: #{tpu_custom_call.1} parent=1 // pred_check_branch
      %54 = sbr.rel (0) target = $region21
    $region20: #{tpu_custom_call.1} parent=1 // pred_region
      _
    $region21: #{tpu_custom_call.1} parent=1 // pred_fallthru
      _
    // Predicated region
    $region22: #{tpu_custom_call.1} parent=1 // pred_check
      _
    $region23: #{tpu_custom_call.1} parent=1 // pred_check_branch
      %56 = sbr.rel (0) target = $region25
    $region24: #{tpu_custom_call.1} parent=1 // pred_region
      _
    $region25: #{tpu_custom_call.1} parent=1 // pred_fallthru
      _
    // Predicated region
    $region26: #{tpu_custom_call.1} parent=1 // pred_check
      _
    $region27: #{tpu_custom_call.1} parent=1 // pred_check_branch
      %58 = sbr.rel (0) target = $region29
    $region28: #{tpu_custom_call.1} parent=1 // pred_region
      _
    $region29: #{tpu_custom_call.1} parent=1 // pred_fallthru
      _
    // Predicated region
    $region30: #{tpu_custom_call.1} parent=1 // pred_check
      _
    $region31: #{tpu_custom_call.1} parent=1 // pred_check_branch
      %60 = sbr.rel (0) target = $region33
    $region32: #{tpu_custom_call.1} parent=1 // pred_region
      %61 = dma.done [#allocation3], 256
    $region33: #{tpu_custom_call.1} parent=1 // pred_fallthru
      _
    // Predicated region
    $region34: #{tpu_custom_call.1} parent=1 // pred_check
      _
    $region35: #{tpu_custom_call.1} parent=1 // pred_check_branch
      %63 = sbr.rel (0) target = $region37
    $region36: #{tpu_custom_call.1} parent=1 // pred_region
      %64 = dma.done [#allocation6], 1024
    $region37: #{tpu_custom_call.1} parent=1 // pred_fallthru
      _
    // Predicated region
    $region38: #{tpu_custom_call.1} parent=1 // pred_check
      _
    $region39: #{tpu_custom_call.1} parent=1 // pred_check_branch
      %66 = sbr.rel (0) target = $region41
    $region40: #{tpu_custom_call.1} parent=1 // pred_region
      %67 = dma.done [#allocation6], 1024
    $region41: #{tpu_custom_call.1} parent=1 // pred_fallthru
      _
    %v69 = vld [vmem:[#allocation2] sm:$0xff]
    %v70 = vld [vmem:[#allocation2 + $0x8] sm:$0xff]
    %71 = vadd.xlane.f32.xlu0 %v69
    %v72 = vpop.xlane.xlu0 %71
    %73 = vadd.xlane.f32.xlu0 %v70
    %v74 = vpop.xlane.xlu0 %73
    %v75 = vmul.f32 %v72, 0.03125
    %v76 = vmul.f32 %v74, 0.03125
    %v77 = vsub.f32 %v69, %v75
    %v78 = vsub.f32 %v70, %v76
    %v79 = vlaneseq
    %v80 = vand.u32 %v79, 127
    %vm81 = vcmp.lt.s32.totalorder %v80, 32
    %v82 = vsel %vm81, 1, 0
    %vm83 = vcmp.eq.s32.totalorder %v82, 1
    %v84 = vsel %vm83, %v77, 0.0
    %v85 = vsel %vm83, %v78, 0.0
    %v86 = vmul.f32 %v84, %v84
    %v87 = vmul.f32 %v85, %v85
    %88 = vadd.xlane.f32.xlu0 %v86
    %v89 = vpop.xlane.xlu0 %88
    %90 = vadd.xlane.f32.xlu0 %v87
    %v91 = vpop.xlane.xlu0 %90
    %v92 = vmul.f32 %v89, 0.03125
    %v93 = vmul.f32 %v91, 0.03125
    %v94 = vadd.f32 %v92, 1e-06
    %v95 = vadd.f32 %v93, 1e-06
    %v96 = vrsqrt.pop %v94
    %v97 = vrsqrt.pop %v95
    %v98 = vmul.f32 %v84, %v96
    %v99 = vmul.f32 %v85, %v97
    %v100 = vld [vmem:[%s5] sm:$0x1]
    %v102 = vlaneseq
    %v103 = vshrl.u32 %v102, 7
    %v104 = vsub.s32 0, %v103
    %v105 = vrot.slane %v100, %v104
    %v107 = vmul.f32 %v98, %v105
    %v108 = vmul.f32 %v99, %v105
    %v109 = vld [vmem:[%s6] sm:$0x1]
    %v111 = vlaneseq
    %v112 = vshrl.u32 %v111, 7
    %v113 = vsub.s32 0, %v112
    %v114 = vrot.slane %v109, %v113
    %v116 = vadd.f32 %v107, %v114
    %v117 = vadd.f32 %v108, %v114
    %v118 = vpack.c.bf16 %v117, %v116
    %v119 = vld [vmem:[#allocation5] sm:$0xf]
    %v120 = vld [vmem:[#allocation5 + $0x4] sm:$0xf]
    %v121 = vld [vmem:[#allocation5 + $0x8] sm:$0xf]
    %v122 = vld [vmem:[#allocation5 + $0xc] sm:$0xf]
    %v123 = vld [vmem:[#allocation5 + $0x10] sm:$0xf]
    %v124 = vld [vmem:[#allocation5 + $0x14] sm:$0xf]
    %v125 = vld [vmem:[#allocation5 + $0x18] sm:$0xf]
    %v126 = vld [vmem:[#allocation5 + $0x1c] sm:$0xf]
    %v127 = vld [vmem:[#allocation5 + $0x20] sm:$0xf]
    %v128 = vld [vmem:[#allocation5 + $0x24] sm:$0xf]
    %v129 = vld [vmem:[#allocation5 + $0x28] sm:$0xf]
    %v130 = vld [vmem:[#allocation5 + $0x2c] sm:$0xf]
    %v131 = vld [vmem:[#allocation5 + $0x30] sm:$0xf]
    %v132 = vld [vmem:[#allocation5 + $0x34] sm:$0xf]
    %v133 = vld [vmem:[#allocation5 + $0x38] sm:$0xf]
    %v134 = vld [vmem:[#allocation5 + $0x3c] sm:$0xf]
    %v135 = vld [vmem:[%s2] sm:$0x1]
    %v136 = vld [vmem:[#allocation7] sm:$0xf]
    %v137 = vld [vmem:[#allocation7 + $0x4] sm:$0xf]
    %v138 = vld [vmem:[#allocation7 + $0x8] sm:$0xf]
    %v139 = vld [vmem:[#allocation7 + $0xc] sm:$0xf]
    %v140 = vld [vmem:[#allocation7 + $0x10] sm:$0xf]
    %v141 = vld [vmem:[#allocation7 + $0x14] sm:$0xf]
    %v142 = vld [vmem:[#allocation7 + $0x18] sm:$0xf]
    %v143 = vld [vmem:[#allocation7 + $0x1c] sm:$0xf]
    %v144 = vld [vmem:[#allocation7 + $0x20] sm:$0xf]
    %v145 = vld [vmem:[#allocation7 + $0x24] sm:$0xf]
    %v146 = vld [vmem:[#allocation7 + $0x28] sm:$0xf]
    %v147 = vld [vmem:[#allocation7 + $0x2c] sm:$0xf]
    %v148 = vld [vmem:[#allocation7 + $0x30] sm:$0xf]
    %v149 = vld [vmem:[#allocation7 + $0x34] sm:$0xf]
    %v150 = vld [vmem:[#allocation7 + $0x38] sm:$0xf]
    %v151 = vld [vmem:[#allocation7 + $0x3c] sm:$0xf]
    %v153 = vlaneseq
    %v154 = vshrl.u32 %v153, 7
    %v155 = vsub.s32 0, %v154
    %v156 = vrot.slane %v135, %v155
    %v174 = vunpack.c.l.b16 %v119
    %v175 = vunpack.c.l.b16 %v120
    %v176 = vunpack.c.l.b16 %v121
    %v177 = vunpack.c.l.b16 %v122
    %v178 = vunpack.c.l.b16 %v123
    %v179 = vunpack.c.l.b16 %v124
    %v180 = vunpack.c.l.b16 %v125
    %v181 = vunpack.c.l.b16 %v126
    %v182 = vunpack.c.l.b16 %v127
    %v183 = vunpack.c.l.b16 %v128
    %v184 = vunpack.c.l.b16 %v129
    %v185 = vunpack.c.l.b16 %v130
    %v186 = vunpack.c.l.b16 %v131
    %v187 = vunpack.c.l.b16 %v132
    %v188 = vunpack.c.l.b16 %v133
    %v189 = vunpack.c.l.b16 %v134
    %v190 = vpack.c.b16 %v175, %v174
    %v191 = vpack.c.b16 %v177, %v176
    %v192 = vpack.c.b16 %v179, %v178
    %v193 = vpack.c.b16 %v181, %v180
    %v194 = vpack.c.b16 %v183, %v182
    %v195 = vpack.c.b16 %v185, %v184
    %v196 = vpack.c.b16 %v187, %v186
    %v197 = vpack.c.b16 %v189, %v188
    %206 = vmatprep.subr.bf16.mxu0 0
    %207 = vmatpush1.bf16.msra.mxu0 %v190
    %208 = vmatprep.subr.bf16.mxu0 0
    %209 = vmatpush1.bf16.msra.mxu0 %v191
    %210 = vmatprep.subr.bf16.mxu0 0
    %211 = vmatpush1.bf16.msra.mxu0 %v192
    %212 = vmatprep.subr.bf16.mxu0 0
    %213 = vmatpush1.bf16.msra.mxu0 %v193
    %214 = vmatprep.subr.bf16.mxu0 0
    %215 = vmatpush1.bf16.msra.mxu0 %v194
    %216 = vmatprep.subr.bf16.mxu0 0
    %217 = vmatpush1.bf16.msra.mxu0 %v195
    %218 = vmatprep.subr.bf16.mxu0 0
    %219 = vmatpush1.bf16.msra.mxu0 %v196
    %220 = vmatprep.subr.bf16.mxu0 0
    %221 = vmatpush1.bf16.msra.mxu0 %v197
    %222 = vmatprep.subr.bf16.mxu0 0
    %223 = vmatpush1.bf16.msra.mxu0 0
    %224 = vmatprep.subr.bf16.mxu0 0
    %225 = vmatpush1.bf16.msra.mxu0 0
    %226 = vmatprep.subr.bf16.mxu0 0
    %227 = vmatpush1.bf16.msra.mxu0 0
    %228 = vmatprep.subr.bf16.mxu0 0
    %229 = vmatpush1.bf16.msra.mxu0 0
    %230 = vmatprep.subr.bf16.mxu0 0
    %231 = vmatpush1.bf16.msra.mxu0 0
    %232 = vmatprep.subr.bf16.mxu0 0
    %233 = vmatpush1.bf16.msra.mxu0 0
    %234 = vmatprep.subr.bf16.mxu0 0
    %235 = vmatpush1.bf16.msra.mxu0 0
    %236 = vmatprep.subr.bf16.mxu0 0
    %237 = vmatpush1.bf16.msra.mxu0 0
    %238 = vmatprep.mubr.bf16.mxu0 0
    %239 = vmatmul.mubr.bf16.gmra.mrb[0].mxu0 %v118
    %v240 = vpop.f32.mrb[0].mxu0
    %v241 = vadd.f32 %v156, %v240
    %v242 = vpop.f32.mrb[0].mxu0
    %v243 = vpop.f32.mrb[0].mxu0
    %v244 = vadd.f32 %v156, %v243
    %v245 = vpop.f32.mrb[0].mxu0
    %246 = vdwg.mxu0
    %v247 = vmax.f32 %v241, 0.0
    %v248 = vmax.f32 %v244, 0.0
    %v249 = vpack.c.bf16 %v248, %v247
    %v250 = vld [vmem:[%s4] sm:$0x1]
    %v252 = vlaneseq
    %v253 = vshrl.u32 %v252, 7
    %v254 = vsub.s32 0, %v253
    %v255 = vrot.slane %v250, %v254
    %v273 = vunpack.c.l.b16 %v136
    %v274 = vunpack.c.l.b16 %v137
    %v275 = vunpack.c.l.b16 %v138
    %v276 = vunpack.c.l.b16 %v139
    %v277 = vunpack.c.l.b16 %v140
    %v278 = vunpack.c.l.b16 %v141
    %v279 = vunpack.c.l.b16 %v142
    %v280 = vunpack.c.l.b16 %v143
    %v281 = vunpack.c.l.b16 %v144
    %v282 = vunpack.c.l.b16 %v145
    %v283 = vunpack.c.l.b16 %v146
    %v284 = vunpack.c.l.b16 %v147
    %v285 = vunpack.c.l.b16 %v148
    %v286 = vunpack.c.l.b16 %v149
    %v287 = vunpack.c.l.b16 %v150
    %v288 = vunpack.c.l.b16 %v151
    %v289 = vpack.c.b16 %v274, %v273
    %v290 = vpack.c.b16 %v276, %v275
    %v291 = vpack.c.b16 %v278, %v277
    %v292 = vpack.c.b16 %v280, %v279
    %v293 = vpack.c.b16 %v282, %v281
    %v294 = vpack.c.b16 %v284, %v283
    %v295 = vpack.c.b16 %v286, %v285
    %v296 = vpack.c.b16 %v288, %v287
    %305 = vmatprep.subr.bf16.mxu0 0
    %306 = vmatpush1.bf16.msra.mxu0 %v289
    %307 = vmatprep.subr.bf16.mxu0 0
    %308 = vmatpush1.bf16.msra.mxu0 %v290
    %309 = vmatprep.subr.bf16.mxu0 0
    %310 = vmatpush1.bf16.msra.mxu0 %v291
    %311 = vmatprep.subr.bf16.mxu0 0
    %312 = vmatpush1.bf16.msra.mxu0 %v292
    %313 = vmatprep.subr.bf16.mxu0 0
    %314 = vmatpush1.bf16.msra.mxu0 %v293
    %315 = vmatprep.subr.bf16.mxu0 0
    %316 = vmatpush1.bf16.msra.mxu0 %v294
    %317 = vmatprep.subr.bf16.mxu0 0
    %318 = vmatpush1.bf16.msra.mxu0 %v295
    %319 = vmatprep.subr.bf16.mxu0 0
    %320 = vmatpush1.bf16.msra.mxu0 %v296
    %321 = vmatprep.subr.bf16.mxu0 0
    %322 = vmatpush1.bf16.msra.mxu0 0
    %323 = vmatprep.subr.bf16.mxu0 0
    %324 = vmatpush1.bf16.msra.mxu0 0
    %325 = vmatprep.subr.bf16.mxu0 0
    %326 = vmatpush1.bf16.msra.mxu0 0
    %327 = vmatprep.subr.bf16.mxu0 0
    %328 = vmatpush1.bf16.msra.mxu0 0
    %329 = vmatprep.subr.bf16.mxu0 0
    %330 = vmatpush1.bf16.msra.mxu0 0
    %331 = vmatprep.subr.bf16.mxu0 0
    %332 = vmatpush1.bf16.msra.mxu0 0
    %333 = vmatprep.subr.bf16.mxu0 0
    %334 = vmatpush1.bf16.msra.mxu0 0
    %335 = vmatprep.subr.bf16.mxu0 0
    %336 = vmatpush1.bf16.msra.mxu0 0
    %337 = vmatprep.mubr.bf16.mxu0 0
    %338 = vmatmul.mubr.bf16.gmra.mrb[0].mxu0 %v249
    %v339 = vpop.f32.mrb[0].mxu0
    %v340 = vadd.f32 %v255, %v339
    %v341 = vpop.f32.mrb[0].mxu0
    %v342 = vpop.f32.mrb[0].mxu0
    %v343 = vadd.f32 %v255, %v342
    %v344 = vpop.f32.mrb[0].mxu0
    %345 = vdwg.mxu0
    %v346 = vadd.f32 %v340, %v69
    %v347 = vadd.f32 %v343, %v70
    %348 = vst [vmem:[#allocation8] sm:$0xff] %v346
    %349 = vst [vmem:[#allocation8 + $0x8] sm:$0xff] %v347
    // Predicated region
    $region42: #{tpu_custom_call.1} parent=1 // pred_check
      _
    $region43: #{tpu_custom_call.1} parent=1 // pred_check_branch
      %351 = sbr.rel (0) target = $region45
    $region44: #{tpu_custom_call.1} parent=1 // pred_region
      %s353 = ssub.s32 256, 256
      %354 = vsyncadd [#allocation4], %s353
      %s355 = sshll.u32 [#allocation8], 4
      %s356 = int_to_ptr.vmem [resolvable:$true] %s355
      %361 = dma.vmem_to_hbm [thread:$0]  %s356, 256, %s7, [#allocation4], 128, 128, 8
    $region45: #{tpu_custom_call.1} parent=1 // pred_fallthru
      _
    // Predicated region
    $region46: #{tpu_custom_call.1} parent=1 // pred_check
      _
    $region47: #{tpu_custom_call.1} parent=1 // pred_check_branch
      %363 = sbr.rel (0) target = $region49
    $region48: #{tpu_custom_call.1} parent=1 // pred_region
      %364 = dma.done [#allocation4], 256
    $region49: #{tpu_custom_call.1} parent=1 // pred_fallthru
      _
    %365 = vsyncpa [#allocation3], 1
    %366 = vsyncpa [#allocation6], 1
    %367 = vsyncpa [#allocation4], 1

// kernel: tpu_custom_call.1
$region0: #{tpu_custom_call.1}
  #allocation0 [shape = 'u32[]', space=smem, size = 0x4, offset = 0x4, fixed_abs, tag = 'smem constant byte address 0x4 - core index']
  #allocation1 [shape = 'u32[144,128]{1,0:T(1,128)}', space=vmem, size = 0x12000, scoped, tag = 'internal scratch']
  %s0 = inlined_call_operand.hbm [shape: f32[16,128], index: 0, kind: input, shape index: {}, may-alias: {0,7}]
  %s1 = inlined_call_operand.hbm [shape: bf16[128,128], index: 1, kind: input, shape index: {}]
  %s2 = inlined_call_operand.vmem [shape: f32[1,128], index: 2, kind: input, shape index: {}]
  %s3 = inlined_call_operand.hbm [shape: bf16[128,128], index: 3, kind: input, shape index: {}]
  %s4 = inlined_call_operand.vmem [shape: f32[1,128], index: 4, kind: input, shape index: {}]
  %s5 = inlined_call_operand.vmem [shape: f32[1,128], index: 5, kind: input, shape index: {}]
  %s6 = inlined_call_operand.vmem [shape: f32[1,128], index: 6, kind: input, shape index: {}]
  %s7 = inlined_call_operand.hbm [shape: f32[16,128], index: 7, kind: output, shape index: {}, may-alias: {0,7}]
  %s8 = sld [smem:[#allocation0]]
  $region50: #{tpu_custom_call.1} parent=0
    _
  %s10 = ssub.s32 1, %s8
  %s11 = scalar_select 0, %s10, %s8
  $region1: #{tpu_custom_call.1} parent=0
    #allocation2 [shape = 'u8[8192]{0}', space=vmem, size = 0x2000, scoped, tag = 'input window, operand 0, single buffered']
    #allocation3 [shape = 's32[1]{0}', space=sflag, size = 0x4, scoped, tag = 'scoped memory for tpu_custom_call.1']
    #allocation4 [shape = 's32[1]{0}', space=sflag, size = 0x4, scoped, tag = 'scoped memory for tpu_custom_call.1']
    #allocation5 [shape = 'u8[32768]{0}', space=vmem, size = 0x8000, scoped, tag = 'input window, operand 1, single buffered']
    #allocation6 [shape = 's32[1]{0}', space=sflag, size = 0x4, scoped, tag = 'scoped memory for tpu_custom_call.1']
    #allocation7 [shape = 'u8[32768]{0}', space=vmem, size = 0x8000, scoped, tag = 'input window, operand 3, single buffered']
    #allocation8 [shape = 'u8[8192]{0}', space=vmem, size = 0x2000, scoped, tag = 'output window, operand 0, single buffered']
    %12 = vsyncpa [#allocation3], 0
    %13 = vsyncpa [#allocation6], 0
    %14 = vsyncpa [#allocation4], 0
    // Predicated region
    $region2: #{tpu_custom_call.1} parent=1 // pred_check
      _
    $region3: #{tpu_custom_call.1} parent=1 // pred_check_branch
      %16 = sbr.rel (0) target = $region5
    $region4: #{tpu_custom_call.1} parent=1 // pred_region
      %s18 = ssub.s32 256, 256
      %19 = vsyncadd [#allocation3], %s18
      %s20 = sshll.u32 [#allocation2], 4
      %s21 = int_to_ptr.vmem [resolvable:$true] %s20
      %26 = dma.hbm_to_vmem [thread:$0]  %s0, 256, %s21, [#allocation3], 128, 128, 8
    $region5: #{tpu_custom_call.1} parent=1 // pred_fallthru
      _
    // Predicated region
    $region6: #{tpu_custom_call.1} parent=1 // pred_check
      _
    $region7: #{tpu_custom_call.1} parent=1 // pred_check_branch
      %28 = sbr.rel (0) target = $region9
    $region8: #{tpu_custom_call.1} parent=1 // pred_region
      %s30 = ssub.s32 1024, 1024
      %31 = vsyncadd [#allocation6], %s30
      %s32 = sshll.u32 [#allocation5], 4
      %s33 = int_to_ptr.vmem [resolvable:$true] %s32
      %38 = dma.hbm_to_vmem [thread:$0]  %s1, 1024, %s33, [#allocation6], 64, 64, 4
    $region9: #{tpu_custom_call.1} parent=1 // pred_fallthru
      _
    // Predicated region
    $region10: #{tpu_custom_call.1} parent=1 // pred_check
      _
    $region11: #{tpu_custom_call.1} parent=1 // pred_check_branch
      %40 = sbr.rel (0) target = $region13
    $region12: #{tpu_custom_call.1} parent=1 // pred_region
      _
    $region13: #{tpu_custom_call.1} parent=1 // pred_fallthru
      _
    // Predicated region
    $region14: #{tpu_custom_call.1} parent=1 // pred_check
      _
    $region15: #{tpu_custom_call.1} parent=1 // pred_check_branch
      %42 = sbr.rel (0) target = $region17
    $region16: #{tpu_custom_call.1} parent=1 // pred_region
      %s44 = ssub.s32 1024, 1024
      %45 = vsyncadd [#allocation6], %s44
      %s46 = sshll.u32 [#allocation7], 4
      %s47 = int_to_ptr.vmem [resolvable:$true] %s46
      %52 = dma.hbm_to_vmem [thread:$0]  %s3, 1024, %s47, [#allocation6], 64, 64, 4
    $region17: #{tpu_custom_call.1} parent=1 // pred_fallthru
      _
    // Predicated region
    $region18: #{tpu_custom_call.1} parent=1 // pred_check
      _
    $region19: #{tpu_custom_call.1} parent=1 // pred_check_branch
      %54 = sbr.rel (0) target = $region21
    $region20: #{tpu_custom_call.1} parent=1 // pred_region
      _
    $region21: #{tpu_custom_call.1} parent=1 // pred_fallthru
      _
    // Predicated region
    $region22: #{tpu_custom_call.1} parent=1 // pred_check
      _
    $region23: #{tpu_custom_call.1} parent=1 // pred_check_branch
      %56 = sbr.rel (0) target = $region25
    $region24: #{tpu_custom_call.1} parent=1 // pred_region
      _
    $region25: #{tpu_custom_call.1} parent=1 // pred_fallthru
      _
    // Predicated region
    $region26: #{tpu_custom_call.1} parent=1 // pred_check
      _
    $region27: #{tpu_custom_call.1} parent=1 // pred_check_branch
      %58 = sbr.rel (0) target = $region29
    $region28: #{tpu_custom_call.1} parent=1 // pred_region
      _
    $region29: #{tpu_custom_call.1} parent=1 // pred_fallthru
      _
    // Predicated region
    $region30: #{tpu_custom_call.1} parent=1 // pred_check
      _
    $region31: #{tpu_custom_call.1} parent=1 // pred_check_branch
      %60 = sbr.rel (0) target = $region33
    $region32: #{tpu_custom_call.1} parent=1 // pred_region
      %61 = dma.done [#allocation3], 256
    $region33: #{tpu_custom_call.1} parent=1 // pred_fallthru
      _
    // Predicated region
    $region34: #{tpu_custom_call.1} parent=1 // pred_check
      _
    $region35: #{tpu_custom_call.1} parent=1 // pred_check_branch
      %63 = sbr.rel (0) target = $region37
    $region36: #{tpu_custom_call.1} parent=1 // pred_region
      %64 = dma.done [#allocation6], 1024
    $region37: #{tpu_custom_call.1} parent=1 // pred_fallthru
      _
    // Predicated region
    $region38: #{tpu_custom_call.1} parent=1 // pred_check
      _
    $region39: #{tpu_custom_call.1} parent=1 // pred_check_branch
      %66 = sbr.rel (0) target = $region41
    $region40: #{tpu_custom_call.1} parent=1 // pred_region
      %67 = dma.done [#allocation6], 1024
    $region41: #{tpu_custom_call.1} parent=1 // pred_fallthru
      _
    %v69 = vld [vmem:[#allocation2] sm:$0xff]
    %v70 = vld [vmem:[#allocation2 + $0x8] sm:$0xff]
    %71 = vadd.xlane.f32.xlu0 %v69
    %v72 = vpop.xlane.xlu0 %71
    %73 = vadd.xlane.f32.xlu0 %v70
    %v74 = vpop.xlane.xlu0 %73
    %v75 = vmul.f32 %v72, 0.03125
    %v76 = vmul.f32 %v74, 0.03125
    %v77 = vsub.f32 %v69, %v75
    %v78 = vsub.f32 %v70, %v76
    %v79 = vlaneseq
    %v80 = vand.u32 %v79, 127
    %vm81 = vcmp.lt.s32.totalorder %v80, 32
    %v82 = vsel %vm81, 1, 0
    %vm83 = vcmp.eq.s32.totalorder %v82, 1
    %v84 = vsel %vm83, %v77, 0.0
    %v85 = vsel %vm83, %v78, 0.0
    %v86 = vmul.f32 %v84, %v84
    %v87 = vmul.f32 %v85, %v85
    %88 = vadd.xlane.f32.xlu0 %v86
    %v89 = vpop.xlane.xlu0 %88
    %90 = vadd.xlane.f32.xlu0 %v87
    %v91 = vpop.xlane.xlu0 %90
    %v92 = vmul.f32 %v89, 0.03125
    %v93 = vmul.f32 %v91, 0.03125
    %v94 = vadd.f32 %v92, 1e-06
    %v95 = vadd.f32 %v93, 1e-06
    %v96 = vrsqrt.pop %v94
    %v97 = vrsqrt.pop %v95
    %v98 = vmul.f32 %v84, %v96
    %v99 = vmul.f32 %v85, %v97
    %v100 = vld [vmem:[%s5] sm:$0x1]
    %v102 = vlaneseq
    %v103 = vshrl.u32 %v102, 7
    %v104 = vsub.s32 0, %v103
    %v105 = vrot.slane %v100, %v104
    %v107 = vmul.f32 %v98, %v105
    %v108 = vmul.f32 %v99, %v105
    %v109 = vld [vmem:[%s6] sm:$0x1]
    %v111 = vlaneseq
    %v112 = vshrl.u32 %v111, 7
    %v113 = vsub.s32 0, %v112
    %v114 = vrot.slane %v109, %v113
    %v116 = vadd.f32 %v107, %v114
    %v117 = vadd.f32 %v108, %v114
    %v118 = vpack.c.bf16 %v117, %v116
    %v119 = vld [vmem:[#allocation5] sm:$0xf]
    %v120 = vld [vmem:[#allocation5 + $0x4] sm:$0xf]
    %v121 = vld [vmem:[#allocation5 + $0x8] sm:$0xf]
    %v122 = vld [vmem:[#allocation5 + $0xc] sm:$0xf]
    %v123 = vld [vmem:[#allocation5 + $0x10] sm:$0xf]
    %v124 = vld [vmem:[#allocation5 + $0x14] sm:$0xf]
    %v125 = vld [vmem:[#allocation5 + $0x18] sm:$0xf]
    %v126 = vld [vmem:[#allocation5 + $0x1c] sm:$0xf]
    %v127 = vld [vmem:[#allocation5 + $0x20] sm:$0xf]
    %v128 = vld [vmem:[#allocation5 + $0x24] sm:$0xf]
    %v129 = vld [vmem:[#allocation5 + $0x28] sm:$0xf]
    %v130 = vld [vmem:[#allocation5 + $0x2c] sm:$0xf]
    %v131 = vld [vmem:[#allocation5 + $0x30] sm:$0xf]
    %v132 = vld [vmem:[#allocation5 + $0x34] sm:$0xf]
    %v133 = vld [vmem:[#allocation5 + $0x38] sm:$0xf]
    %v134 = vld [vmem:[#allocation5 + $0x3c] sm:$0xf]
    %v135 = vld [vmem:[%s2] sm:$0x1]
    %v136 = vld [vmem:[#allocation7] sm:$0xf]
    %v137 = vld [vmem:[#allocation7 + $0x4] sm:$0xf]
    %v138 = vld [vmem:[#allocation7 + $0x8] sm:$0xf]
    %v139 = vld [vmem:[#allocation7 + $0xc] sm:$0xf]
    %v140 = vld [vmem:[#allocation7 + $0x10] sm:$0xf]
    %v141 = vld [vmem:[#allocation7 + $0x14] sm:$0xf]
    %v142 = vld [vmem:[#allocation7 + $0x18] sm:$0xf]
    %v143 = vld [vmem:[#allocation7 + $0x1c] sm:$0xf]
    %v144 = vld [vmem:[#allocation7 + $0x20] sm:$0xf]
    %v145 = vld [vmem:[#allocation7 + $0x24] sm:$0xf]
    %v146 = vld [vmem:[#allocation7 + $0x28] sm:$0xf]
    %v147 = vld [vmem:[#allocation7 + $0x2c] sm:$0xf]
    %v148 = vld [vmem:[#allocation7 + $0x30] sm:$0xf]
    %v149 = vld [vmem:[#allocation7 + $0x34] sm:$0xf]
    %v150 = vld [vmem:[#allocation7 + $0x38] sm:$0xf]
    %v151 = vld [vmem:[#allocation7 + $0x3c] sm:$0xf]
    %v153 = vlaneseq
    %v154 = vshrl.u32 %v153, 7
    %v155 = vsub.s32 0, %v154
    %v156 = vrot.slane %v135, %v155
    %v174 = vunpack.c.l.b16 %v119
    %v175 = vunpack.c.l.b16 %v120
    %v176 = vunpack.c.l.b16 %v121
    %v177 = vunpack.c.l.b16 %v122
    %v178 = vunpack.c.l.b16 %v123
    %v179 = vunpack.c.l.b16 %v124
    %v180 = vunpack.c.l.b16 %v125
    %v181 = vunpack.c.l.b16 %v126
    %v182 = vunpack.c.l.b16 %v127
    %v183 = vunpack.c.l.b16 %v128
    %v184 = vunpack.c.l.b16 %v129
    %v185 = vunpack.c.l.b16 %v130
    %v186 = vunpack.c.l.b16 %v131
    %v187 = vunpack.c.l.b16 %v132
    %v188 = vunpack.c.l.b16 %v133
    %v189 = vunpack.c.l.b16 %v134
    %v190 = vpack.c.b16 %v175, %v174
    %v191 = vpack.c.b16 %v177, %v176
    %v192 = vpack.c.b16 %v179, %v178
    %v193 = vpack.c.b16 %v181, %v180
    %v194 = vpack.c.b16 %v183, %v182
    %v195 = vpack.c.b16 %v185, %v184
    %v196 = vpack.c.b16 %v187, %v186
    %v197 = vpack.c.b16 %v189, %v188
    %206 = vmatprep.subr.bf16.mxu0 0
    %207 = vmatpush1.bf16.msra.mxu0 %v190
    %208 = vmatprep.subr.bf16.mxu0 0
    %209 = vmatpush1.bf16.msra.mxu0 %v191
    %210 = vmatprep.subr.bf16.mxu0 0
    %211 = vmatpush1.bf16.msra.mxu0 %v192
    %212 = vmatprep.subr.bf16.mxu0 0
    %213 = vmatpush1.bf16.msra.mxu0 %v193
    %214 = vmatprep.subr.bf16.mxu0 0
    %215 = vmatpush1.bf16.msra.mxu0 %v194
    %216 = vmatprep.subr.bf16.mxu0 0
    %217 = vmatpush1.bf16.msra.mxu0 %v195
    %218 = vmatprep.subr.bf16.mxu0 0
    %219 = vmatpush1.bf16.msra.mxu0 %v196
    %220 = vmatprep.subr.bf16.mxu0 0
    %221 = vmatpush1.bf16.msra.mxu0 %v197
    %222 = vmatprep.subr.bf16.mxu0 0
    %223 = vmatpush1.bf16.msra.mxu0 0
    %224 = vmatprep.subr.bf16.mxu0 0
    %225 = vmatpush1.bf16.msra.mxu0 0
    %226 = vmatprep.subr.bf16.mxu0 0
    %227 = vmatpush1.bf16.msra.mxu0 0
    %228 = vmatprep.subr.bf16.mxu0 0
    %229 = vmatpush1.bf16.msra.mxu0 0
    %230 = vmatprep.subr.bf16.mxu0 0
    %231 = vmatpush1.bf16.msra.mxu0 0
    %232 = vmatprep.subr.bf16.mxu0 0
    %233 = vmatpush1.bf16.msra.mxu0 0
    %234 = vmatprep.subr.bf16.mxu0 0
    %235 = vmatpush1.bf16.msra.mxu0 0
    %236 = vmatprep.subr.bf16.mxu0 0
    %237 = vmatpush1.bf16.msra.mxu0 0
    %238 = vmatprep.mubr.bf16.mxu0 0
    %239 = vmatmul.mubr.bf16.gmra.mrb[0].mxu0 %v118
    %v240 = vpop.f32.mrb[0].mxu0
    %v241 = vadd.f32 %v156, %v240
    %v242 = vpop.f32.mrb[0].mxu0
    %v243 = vpop.f32.mrb[0].mxu0
    %v244 = vadd.f32 %v156, %v243
    %v245 = vpop.f32.mrb[0].mxu0
    %246 = vdwg.mxu0
    %v247 = vmax.f32 %v241, 0.0
    %v248 = vmax.f32 %v244, 0.0
    %v249 = vpack.c.bf16 %v248, %v247
    %v250 = vld [vmem:[%s4] sm:$0x1]
    %v252 = vlaneseq
    %v253 = vshrl.u32 %v252, 7
    %v254 = vsub.s32 0, %v253
    %v255 = vrot.slane %v250, %v254
    %v273 = vunpack.c.l.b16 %v136
    %v274 = vunpack.c.l.b16 %v137
    %v275 = vunpack.c.l.b16 %v138
    %v276 = vunpack.c.l.b16 %v139
    %v277 = vunpack.c.l.b16 %v140
    %v278 = vunpack.c.l.b16 %v141
    %v279 = vunpack.c.l.b16 %v142
    %v280 = vunpack.c.l.b16 %v143
    %v281 = vunpack.c.l.b16 %v144
    %v282 = vunpack.c.l.b16 %v145
    %v283 = vunpack.c.l.b16 %v146
    %v284 = vunpack.c.l.b16 %v147
    %v285 = vunpack.c.l.b16 %v148
    %v286 = vunpack.c.l.b16 %v149
    %v287 = vunpack.c.l.b16 %v150
    %v288 = vunpack.c.l.b16 %v151
    %v289 = vpack.c.b16 %v274, %v273
    %v290 = vpack.c.b16 %v276, %v275
    %v291 = vpack.c.b16 %v278, %v277
    %v292 = vpack.c.b16 %v280, %v279
    %v293 = vpack.c.b16 %v282, %v281
    %v294 = vpack.c.b16 %v284, %v283
    %v295 = vpack.c.b16 %v286, %v285
    %v296 = vpack.c.b16 %v288, %v287
    %305 = vmatprep.subr.bf16.mxu0 0
    %306 = vmatpush1.bf16.msra.mxu0 %v289
    %307 = vmatprep.subr.bf16.mxu0 0
    %308 = vmatpush1.bf16.msra.mxu0 %v290
    %309 = vmatprep.subr.bf16.mxu0 0
    %310 = vmatpush1.bf16.msra.mxu0 %v291
    %311 = vmatprep.subr.bf16.mxu0 0
    %312 = vmatpush1.bf16.msra.mxu0 %v292
    %313 = vmatprep.subr.bf16.mxu0 0
    %314 = vmatpush1.bf16.msra.mxu0 %v293
    %315 = vmatprep.subr.bf16.mxu0 0
    %316 = vmatpush1.bf16.msra.mxu0 %v294
    %317 = vmatprep.subr.bf16.mxu0 0
    %318 = vmatpush1.bf16.msra.mxu0 %v295
    %319 = vmatprep.subr.bf16.mxu0 0
    %320 = vmatpush1.bf16.msra.mxu0 %v296
    %321 = vmatprep.subr.bf16.mxu0 0
    %322 = vmatpush1.bf16.msra.mxu0 0
    %323 = vmatprep.subr.bf16.mxu0 0
    %324 = vmatpush1.bf16.msra.mxu0 0
    %325 = vmatprep.subr.bf16.mxu0 0
    %326 = vmatpush1.bf16.msra.mxu0 0
    %327 = vmatprep.subr.bf16.mxu0 0
    %328 = vmatpush1.bf16.msra.mxu0 0
    %329 = vmatprep.subr.bf16.mxu0 0
    %330 = vmatpush1.bf16.msra.mxu0 0
    %331 = vmatprep.subr.bf16.mxu0 0
    %332 = vmatpush1.bf16.msra.mxu0 0
    %333 = vmatprep.subr.bf16.mxu0 0
    %334 = vmatpush1.bf16.msra.mxu0 0
    %335 = vmatprep.subr.bf16.mxu0 0
    %336 = vmatpush1.bf16.msra.mxu0 0
    %337 = vmatprep.mubr.bf16.mxu0 0
    %338 = vmatmul.mubr.bf16.gmra.mrb[0].mxu0 %v249
    %v339 = vpop.f32.mrb[0].mxu0
    %v340 = vadd.f32 %v255, %v339
    %v341 = vpop.f32.mrb[0].mxu0
    %v342 = vpop.f32.mrb[0].mxu0
    %v343 = vadd.f32 %v255, %v342
    %v344 = vpop.f32.mrb[0].mxu0
    %345 = vdwg.mxu0
    %v346 = vadd.f32 %v340, %v69
    %v347 = vadd.f32 %v343, %v70
    %348 = vst [vmem:[#allocation8] sm:$0xff] %v346
    %349 = vst [vmem:[#allocation8 + $0x8] sm:$0xff] %v347
    // Predicated region
    $region42: #{tpu_custom_call.1} parent=1 // pred_check
      _
    $region43: #{tpu_custom_call.1} parent=1 // pred_check_branch
      %351 = sbr.rel (0) target = $region45
    $region44: #{tpu_custom_call.1} parent=1 // pred_region
      %s353 = ssub.s32 256, 256
      %354 = vsyncadd [#allocation4], %s353
      %s355 = sshll.u32 [#allocation8], 4
      %s356 = int_to_ptr.vmem [resolvable:$true] %s355
      %361 = dma.vmem_to_hbm [thread:$0]  %s356, 256, %s7, [#allocation4], 128, 128, 8
    $region45: #{tpu_custom_call.1} parent=1 // pred_fallthru
      _
    // Predicated region
    $region46: #{tpu_custom_call.1} parent=1 // pred_check
      _
    $region47: #{tpu_custom_call.1} parent=1 // pred_check_branch
      %363 = sbr.rel (0) target = $region49
    $region48: #{tpu_custom_call.1} parent=1 // pred_region
      %364 = dma.done [#allocation4], 256
    $region49: #{tpu_custom_call.1} parent=1 // pred_fallthru
      _
    %365 = vsyncpa [#allocation3], 1
    %366 = vsyncpa [#allocation6], 1
    %367 = vsyncpa [#allocation4], 1

</llo_original>
